<compile_context>
chip_gen: v5e
topology: v5e:2x2
jax: 0.10.0
libtpu: 0.0.40
codegen_flags: <defaults>
</compile_context>

<pallas_src>
import functools

import jax
import jax.numpy as jnp
from jax.experimental import pallas as pl
from jax.experimental.pallas import tpu as pltpu

_EPS = 1e-07
_MAX_ROT_ANGLE = 1.570796
_MAX_TRANS_ERR = 1.0


# --------------------------- Pallas kernel (hot path) ---------------------------
def _corr_partial_kernel(rows_total, p_ref, c_ref, out_ref):
    """One (row_tile, N) tile of sum((1 - 2*C) * P): writes a (1, N) partial."""
    tr, n = p_ref.shape

    p = p_ref[...]
    if p.dtype != jnp.float32:
        p = p.astype(jnp.float32)

    c = c_ref[...]
    if jnp.issubdtype(c_ref.dtype, jnp.floating):
        contrib = (1.0 - 2.0 * c.astype(jnp.float32)) * p
    else:
        # C is a 0/1 mask: (1 - 2*c) * p == where(c, -p, p), exactly.
        contrib = jnp.where(c != 0, -p, p)

    if rows_total % tr == 0:
        # No padded rows anywhere: pure sublane reduce on every step.
        out_ref[...] = jnp.sum(contrib, axis=0, keepdims=True)
    else:
        # Ragged last tile: mask only on the final grid step, using a cheap
        # (tr, 1) sublane iota broadcast (not a full (tr, n) iota).
        grid = -(-rows_total // tr)                    # static
        valid_last = rows_total - (grid - 1) * tr      # static
        is_last = pl.program_id(0) == (grid - 1)

        @pl.when(jnp.logical_not(is_last))
        def _():
            out_ref[...] = jnp.sum(contrib, axis=0, keepdims=True)

        @pl.when(is_last)
        def _():
            row_ids = jax.lax.broadcasted_iota(jnp.int32, (tr, 1), 0)
            masked = jnp.where(row_ids < valid_last, contrib, 0.0)
            out_ref[...] = jnp.sum(masked, axis=0, keepdims=True)


def _choose_row_tile(rows, n, p_itemsize, c_itemsize,
                     target_step_bytes=4 << 20, min_grid=4):
    """Row tile sized by target input bytes/step, multiple of 32, grid>=min_grid."""
    per_row = n * (p_itemsize + c_itemsize)
    # ~4 MiB of input per grid step amortizes the ~0.35 us per-step overhead.
    tr = max(target_step_bytes // max(per_row, 1), 32)
    # Keep at least `min_grid` steps so v7x's 2 TensorCores both get work
    # (costs nothing on single-TC v5e/v6e).
    tr = min(tr, max(pl.cdiv(rows, min_grid), 32))
    # Multiple of 32: lcm of int8 (32,128) and bf16 (16,128) native tiling.
    tr = (tr // 32) * 32
    tr = max(tr, 32)
    if tr >= rows:
        return int(rows)        # single full-extent block (always legal)
    return int(tr)


def _corr_partial_sums(P2, C2, row_tile=None):
    """P2, C2: (rows, N).  Returns (grid, N) float32 partial sums."""
    rows, n = P2.shape
    p_bytes = jnp.dtype(P2.dtype).itemsize
    c_bytes = jnp.dtype(C2.dtype).itemsize
    if row_tile is None:
        row_tile = _choose_row_tile(rows, n, p_bytes, c_bytes)
    grid = pl.cdiv(rows, row_tile)

    # Explicit VMEM limit: double-buffered inputs + double-buffered (1, N)
    # output + headroom.  Cheap insurance against scoped-VMEM rejection.
    vmem_limit = 2 * row_tile * n * (p_bytes + c_bytes) + 2 * n * 4 + (2 << 20)
    vmem_limit = int(max(vmem_limit, 16 << 20))

    kernel = functools.partial(_corr_partial_kernel, rows)
    return pl.pallas_call(
        kernel,
        out_shape=jax.ShapeDtypeStruct((grid, n), jnp.float32),
        grid_spec=pltpu.PrefetchScalarGridSpec(
            num_scalar_prefetch=0,
            grid=(grid,),
            in_specs=[
                pl.BlockSpec((row_tile, n), lambda i: (i, 0)),   # P
                pl.BlockSpec((row_tile, n), lambda i: (i, 0)),   # C_gt
            ],
            out_specs=pl.BlockSpec((1, n), lambda i: (i, 0)),    # partial sums
        ),
        compiler_params=pltpu.CompilerParams(
            dimension_semantics=("parallel",),
            vmem_limit_bytes=vmem_limit),
    )(P2, C2)


# ------------------------------- JAX glue (O(B)) -------------------------------
def _quaternion_to_matrix(q):
    """Real-first quaternion -> rotation matrix (pytorch3d convention)."""
    w, x, y, z = q[:, 0], q[:, 1], q[:, 2], q[:, 3]
    two_s = 2.0 / jnp.sum(q * q, axis=-1)
    R = jnp.stack([
        1.0 - two_s * (y * y + z * z), two_s * (x * y - z * w), two_s * (x * z + y * w),
        two_s * (x * y + z * w), 1.0 - two_s * (x * x + z * z), two_s * (y * z - x * w),
        two_s * (x * z - y * w), two_s * (y * z + x * w), 1.0 - two_s * (x * x + y * y),
    ], axis=-1)
    return R.reshape(-1, 3, 3)


def loss_with_p_and_quat(theta, P, R_gt, t_gt, C_gt, gamma, *, row_tile=None):
    """Forward of LossWithPandQuat (quaternion case, theta.shape[1] == 7)."""
    B, M, N = P.shape
    # Flattened lane-dense view; reshape of contiguous arrays is free.
    P2 = P.reshape(B * M, N)
    C2 = C_gt.reshape(B * M, N)

    partials = _corr_partial_sums(P2, C2, row_tile=row_tile)
    corr_loss = jnp.sum(partials) / B     # sum over (M,N) per batch, mean over B

    # NOTE: gamma must be a static Python float (matches the PyTorch module,
    # where self.gamma is a constructor constant).
    if gamma > 0.0:
        if theta.shape[1] == 7:
            theta_f = theta.astype(jnp.float32)
            t = theta_f[:, :3]
            R = _quaternion_to_matrix(theta_f[:, 3:])
        else:
            # TODO(synk): angle-axis branch (theta.shape[1] == 6) not implemented.
            raise NotImplementedError("angle-axis branch not implemented")

        R_gt = R_gt.astype(jnp.float32)
        t_gt = t_gt.astype(jnp.float32)

        cos_th = jnp.clip(0.5 * (jnp.sum(R * R_gt, axis=(-2, -1)) - 1.0),
                          -(1.0 - _EPS), 1.0 - _EPS)
        rot_loss = jnp.mean(jnp.minimum(jnp.arccos(cos_th), _MAX_ROT_ANGLE))

        terr = jnp.sqrt(jnp.sum((t - t_gt) ** 2, axis=-1))
        trans_loss = jnp.mean(jnp.minimum(terr, _MAX_TRANS_ERR))

        losses = jnp.stack([corr_loss, rot_loss, trans_loss])
        loss = losses[0] + gamma * (losses[1] + losses[2])
    else:
        losses = jnp.reshape(corr_loss, (1,))
        loss = losses[0]
    return loss, losses


# ---------------------------- plain-JAX reference ----------------------------
def _reference(theta, P, R_gt, t_gt, C_gt, gamma):
    P = P.astype(jnp.float32)
    C = C_gt.astype(jnp.float32)
    corr = jnp.mean(jnp.sum((1.0 - 2.0 * C) * P, axis=(-2, -1)))
    if gamma > 0.0:
        t = theta[:, :3].astype(jnp.float32)
        R = _quaternion_to_matrix(theta[:, 3:].astype(jnp.float32))
        cos = jnp.clip(0.5 * (jnp.sum(R * R_gt, axis=(-2, -1)) - 1.0),
                       -(1.0 - _EPS), 1.0 - _EPS)
        rot = jnp.mean(jnp.minimum(jnp.arccos(cos), _MAX_ROT_ANGLE))
        tr_ = jnp.mean(jnp.minimum(jnp.linalg.norm(t - t_gt, axis=-1),
                                   _MAX_TRANS_ERR))
        losses = jnp.stack([corr, rot, tr_])
        loss = losses[0] + gamma * (losses[1] + losses[2])
    else:
        losses = corr.reshape(1)
        loss = losses[0]
    return loss, losses


if __name__ == "__main__":
    key = jax.random.PRNGKey(0)
    B, M, N = 2, 16, 128
    k1, k2, k3, k4, k5, k6 = jax.random.split(key, 6)

    P = jax.nn.softmax(jax.random.normal(k1, (B, M, N)), axis=-1)         # f32
    C_gt = (jax.random.uniform(k2, (B, M, N)) < 0.1).astype(jnp.int8)     # 0/1 mask

    t = 0.1 * jax.random.normal(k3, (B, 3))
    q = jax.random.normal(k4, (B, 4))
    q = q / jnp.linalg.norm(q, axis=-1, keepdims=True)
    theta = jnp.concatenate([t, q], axis=-1)          # (B, 7) = [t, quat(wxyz)]

    q_gt = jax.random.normal(k5, (B, 4))
    q_gt = q_gt / jnp.linalg.norm(q_gt, axis=-1, keepdims=True)
    R_gt = _quaternion_to_matrix(q_gt)                # (B, 3, 3)
    t_gt = 0.1 * jax.random.normal(k6, (B, 3))

    # gamma > 0 branch
    gamma = 1.0
    loss, losses = loss_with_p_and_quat(theta, P, R_gt, t_gt, C_gt, gamma)
    jax.block_until_ready((loss, losses))
    loss_ref, losses_ref = _reference(theta, P, R_gt, t_gt, C_gt, gamma)
    assert jnp.allclose(losses, losses_ref, atol=1e-5, rtol=1e-5), (losses, losses_ref)
    assert jnp.allclose(loss, loss_ref, atol=1e-5, rtol=1e-5), (loss, loss_ref)

    # gamma == 0 branch (correspondence loss only)
    loss0, losses0 = loss_with_p_and_quat(theta, P, R_gt, t_gt, C_gt, 0.0)
    jax.block_until_ready((loss0, losses0))
    loss0_ref, losses0_ref = _reference(theta, P, R_gt, t_gt, C_gt, 0.0)
    assert jnp.allclose(losses0, losses0_ref, atol=1e-5, rtol=1e-5)
    assert jnp.allclose(loss0, loss0_ref, atol=1e-5, rtol=1e-5)

    # Multi-tile grid, row_tile divides rows exactly (rows=32, tile=8, grid=4).
    part_even = _corr_partial_sums(P.reshape(B * M, N), C_gt.reshape(B * M, N),
                                   row_tile=8)
    corr_even = jnp.sum(part_even) / B
    jax.block_until_ready(corr_even)
    assert jnp.allclose(corr_even, losses0_ref[0], atol=1e-5, rtol=1e-5), (
        corr_even, losses0_ref[0])

    # Ragged-last-tile path (rows=30, tile=8 -> grid=4, 6 valid rows in last).
    Mr = 15
    Pr = jax.nn.softmax(jax.random.normal(k1, (B, Mr, N)), axis=-1)
    Cr = (jax.random.uniform(k2, (B, Mr, N)) < 0.1).astype(jnp.int8)
    part = _corr_partial_sums(Pr.reshape(B * Mr, N), Cr.reshape(B * Mr, N),
                              row_tile=8)
    corr_tiled = jnp.sum(part) / B
    corr_direct = jnp.mean(jnp.sum((1.0 - 2.0 * Cr.astype(jnp.float32)) * Pr,
                                   axis=(-2, -1)))
    jax.block_until_ready(corr_tiled)
    assert jnp.allclose(corr_tiled, corr_direct, atol=1e-5, rtol=1e-5), (
        corr_tiled, corr_direct)

    print("KERNEL_OK")
</pallas_src>

<mosaic_0001>
module attributes {stable_mosaic.version = 11 : i64} {
  func.func @_corr_partial_kernel(%arg0: i32, %arg1: memref<32x128xf32, #tpu.memory_space<vmem>>, %arg2: memref<32x128xi8, #tpu.memory_space<vmem>>, %arg3: memref<1x128xf32, #tpu.memory_space<vmem>>) attributes {dimension_semantics = [#tpu.dimension_semantics<parallel>], iteration_bounds = array<i64: 1>, scalar_prefetch = 0 : i64, scratch_operands = 0 : i64, tpu.core_type = #tpu.core_type<tc>, window_params = [{transform_indices = @transform_0, window_bounds = array<i64: 32, 128>}, {transform_indices = @transform_1, window_bounds = array<i64: 32, 128>}, {transform_indices = @transform_2, window_bounds = array<i64: 1, 128>}]} {
    %c0 = arith.constant 0 : index
    %c0_0 = arith.constant 0 : index
    %0 = vector.load %arg1[%c0, %c0_0] : memref<32x128xf32, #tpu.memory_space<vmem>>, vector<32x128xf32>
    %c0_1 = arith.constant 0 : index
    %c0_2 = arith.constant 0 : index
    %1 = vector.load %arg2[%c0_1, %c0_2] : memref<32x128xi8, #tpu.memory_space<vmem>>, vector<32x128xi8>
    %c0_i8 = arith.constant 0 : i8
    %2 = vector.broadcast %c0_i8 : i8 to vector<32x128xi8>
    %3 = arith.cmpi ne, %1, %2 : vector<32x128xi8>
    %cst = arith.constant 0.000000e+00 : f32
    %4 = vector.broadcast %cst : f32 to vector<32x128xf32>
    %5 = arith.subf %4, %0 : vector<32x128xf32>
    %6 = arith.select %3, %5, %0 : vector<32x128xi1>, vector<32x128xf32>
    %cst_3 = arith.constant dense<0.000000e+00> : vector<128xf32>
    %7 = vector.multi_reduction <add>, %6, %cst_3 [0] : vector<32x128xf32> to vector<128xf32>
    %8 = vector.shape_cast %7 : vector<128xf32> to vector<1x128xf32>
    %c0_4 = arith.constant 0 : index
    %c0_5 = arith.constant 0 : index
    %9 = vector.load %arg3[%c0_4, %c0_5] : memref<1x128xf32, #tpu.memory_space<vmem>>, vector<1x128xf32>
    tpu.vector_store %arg3[%c0_4, %c0_5], %8 {strides = array<i32>} : memref<1x128xf32, #tpu.memory_space<vmem>>, vector<1x128xf32>,
    return
  }
  func.func @transform_0(%arg0: i32) -> (i32, i32) {
    %c0_i32 = arith.constant 0 : i32
    %c0_i32_0 = arith.constant 0 : i32
    return %arg0, %c0_i32 : i32, i32
  }
  func.func @transform_1(%arg0: i32) -> (i32, i32) {
    %c0_i32 = arith.constant 0 : i32
    %c0_i32_0 = arith.constant 0 : i32
    return %arg0, %c0_i32 : i32, i32
  }
  func.func @transform_2(%arg0: i32) -> (i32, i32) {
    %c0_i32 = arith.constant 0 : i32
    %c0_i32_0 = arith.constant 0 : i32
    return %arg0, %c0_i32 : i32, i32
  }
}

</mosaic_0001>

<llo_original>
// kernel: tpu_custom_call.1
$region0: #{tpu_custom_call.1}
  #allocation0 [shape = 'u32[]', space=smem, size = 0x4, offset = 0x4, fixed_abs, tag = 'smem constant byte address 0x4 - core index']
  #allocation1 [shape = 'u32[72,128]{1,0:T(1,128)}', space=vmem, size = 0x9000, scoped, tag = 'internal scratch']
  %s0 = inlined_call_operand.hbm [shape: f32[32,128], index: 0, kind: input, shape index: {}]
  %s1 = inlined_call_operand.hbm [shape: s8[32,128], index: 1, kind: input, shape index: {}]
  %s2 = inlined_call_operand.hbm [shape: f32[1,128], index: 2, kind: output, shape index: {}]
  %s3 = sld [smem:[#allocation0]]
  $region26: #{tpu_custom_call.1} parent=0
    _
  %s5 = ssub.s32 1, %s3
  %s6 = scalar_select 0, %s5, %s3
  $region1: #{tpu_custom_call.1} parent=0
    #allocation2 [shape = 'u8[16384]{0}', space=vmem, size = 0x4000, scoped, tag = 'input window, operand 0, single buffered']
    #allocation3 [shape = 's32[1]{0}', space=sflag, size = 0x4, scoped, tag = 'scoped memory for tpu_custom_call.1']
    #allocation4 [shape = 's32[1]{0}', space=sflag, size = 0x4, scoped, tag = 'scoped memory for tpu_custom_call.1']
    #allocation5 [shape = 'u8[4096]{0}', space=vmem, size = 0x1000, scoped, tag = 'input window, operand 1, single buffered']
    #allocation6 [shape = 's32[1]{0}', space=sflag, size = 0x4, scoped, tag = 'scoped memory for tpu_custom_call.1']
    #allocation7 [shape = 'u8[512]{0}', space=vmem, size = 0x400, scoped, tag = 'output window, operand 0, single buffered']
    %7 = vsyncpa [#allocation3], 0
    %8 = vsyncpa [#allocation6], 0
    %9 = vsyncpa [#allocation4], 0
    // Predicated region
    $region2: #{tpu_custom_call.1} parent=1 // pred_check
      _
    $region3: #{tpu_custom_call.1} parent=1 // pred_check_branch
      %11 = sbr.rel (0) target = $region5
    $region4: #{tpu_custom_call.1} parent=1 // pred_region
      %13 = vsyncadd [#allocation3], 0
      %s14 = sshll.u32 %s0, 4
      %s15 = int_to_ptr.hbm [resolvable:$true] %s14
      %s16 = sshll.u32 [#allocation2], 4
      %s17 = int_to_ptr.vmem [resolvable:$true] %s16
      %22 = dma.hbm_to_vmem [thread:$0]  %s15, 512, %s17, [#allocation3], 128, 128, 8
    $region5: #{tpu_custom_call.1} parent=1 // pred_fallthru
      _
    // Predicated region
    $region6: #{tpu_custom_call.1} parent=1 // pred_check
      _
    $region7: #{tpu_custom_call.1} parent=1 // pred_check_branch
      %24 = sbr.rel (0) target = $region9
    $region8: #{tpu_custom_call.1} parent=1 // pred_region
      %26 = vsyncadd [#allocation6], 0
      %s28 = sshll.u32 %s1, 4
      %s29 = int_to_ptr.hbm [resolvable:$true] %s28
      %s30 = sshll.u32 [#allocation5], 4
      %s31 = int_to_ptr.vmem [resolvable:$true] %s30
      %33 = dma.hbm_to_vmem [thread:$0]  %s29, 128, %s31, [#allocation6]
    $region9: #{tpu_custom_call.1} parent=1 // pred_fallthru
      _
    // Predicated region
    $region10: #{tpu_custom_call.1} parent=1 // pred_check
      _
    $region11: #{tpu_custom_call.1} parent=1 // pred_check_branch
      %35 = sbr.rel (0) target = $region13
    $region12: #{tpu_custom_call.1} parent=1 // pred_region
      %37 = dma.done [#allocation3], 512
    $region13: #{tpu_custom_call.1} parent=1 // pred_fallthru
      _
    // Predicated region
    $region14: #{tpu_custom_call.1} parent=1 // pred_check
      _
    $region15: #{tpu_custom_call.1} parent=1 // pred_check_branch
      %39 = sbr.rel (0) target = $region17
    $region16: #{tpu_custom_call.1} parent=1 // pred_region
      %41 = dma.done [#allocation6], 128
    $region17: #{tpu_custom_call.1} parent=1 // pred_fallthru
      _
    %v44 = vld [vmem:[#allocation2] sm:$0xff]
    %v45 = vld [vmem:[#allocation2 + $0x8] sm:$0xff]
    %v46 = vld [vmem:[#allocation2 + $0x10] sm:$0xff]
    %v47 = vld [vmem:[#allocation2 + $0x18] sm:$0xff]
    %v48 = vld [vmem:[#allocation5] sm:$0xff]
    %vm49 = vnez %v48
    %v50 = vsub.f32 0.0, %v44
    %v51 = vsub.f32 0.0, %v45
    %v52 = vsub.f32 0.0, %v46
    %v53 = vsub.f32 0.0, %v47
    %v54 = vsel %vm49, 16843009, 0
    %v55 = vunpack.c.0.s8 %v54
    %v56 = vunpack.c.1.s8 %v54
    %v57 = vunpack.c.2.s8 %v54
    %v58 = vunpack.c.3.s8 %v54
    %v59 = vpack.c.b16 %v55, %v55
    %v60 = vpack.c.b8 %v59, %v59
    %v61 = vpack.c.b16 %v56, %v56
    %v62 = vpack.c.b8 %v61, %v61
    %v63 = vpack.c.b16 %v57, %v57
    %v64 = vpack.c.b8 %v63, %v63
    %v65 = vpack.c.b16 %v58, %v58
    %v66 = vpack.c.b8 %v65, %v65
    %vm67 = vnez %v60
    %vm68 = vnez %v62
    %vm69 = vnez %v64
    %vm70 = vnez %v66
    %v71 = vsel %vm67, 16843009, 0
    %v72 = vsel %vm68, 16843009, 0
    %v73 = vsel %vm69, 16843009, 0
    %v74 = vsel %vm70, 16843009, 0
    %v75 = vunpack.c.0.s8 %v71
    %v76 = vunpack.c.0.s8 %v72
    %v77 = vunpack.c.0.s8 %v73
    %v78 = vunpack.c.0.s8 %v74
    %vm79 = vcmp.ne.s32.totalorder %v75, 0
    %vm80 = vcmp.ne.s32.totalorder %v76, 0
    %vm81 = vcmp.ne.s32.totalorder %v77, 0
    %vm82 = vcmp.ne.s32.totalorder %v78, 0
    %v83 = vsel %vm79, %v50, %v44
    %v84 = vsel %vm80, %v51, %v45
    %v85 = vsel %vm81, %v52, %v46
    %v86 = vsel %vm82, %v53, %v47
    %v87 = vadd.f32 %v83, %v84
    %v88 = vadd.f32 %v87, %v85
    %v89 = vadd.f32 %v88, %v86
    %v90 = vrot.slane %v89, 4
    %v91 = vadd.f32 %v89, %v90
    %v92 = vrot.slane %v91, 2
    %v93 = vadd.f32 %v91, %v92
    %v94 = vrot.slane %v93, 1
    %v95 = vadd.f32 %v93, %v94
    %96 = vst [vmem:[#allocation7] sm:$0x1] %v95
    // Predicated region
    $region18: #{tpu_custom_call.1} parent=1 // pred_check
      _
    $region19: #{tpu_custom_call.1} parent=1 // pred_check_branch
      %98 = sbr.rel (0) target = $region21
    $region20: #{tpu_custom_call.1} parent=1 // pred_region
      %100 = vsyncadd [#allocation4], 0
      %s102 = sshll.u32 [#allocation7], 4
      %s103 = int_to_ptr.vmem [resolvable:$true] %s102
      %s104 = sshll.u32 %s2, 4
      %s105 = int_to_ptr.hbm [resolvable:$true] %s104
      %107 = dma.vmem_to_hbm [thread:$0]  %s103, 16, %s105, [#allocation4]
    $region21: #{tpu_custom_call.1} parent=1 // pred_fallthru
      _
    // Predicated region
    $region22: #{tpu_custom_call.1} parent=1 // pred_check
      _
    $region23: #{tpu_custom_call.1} parent=1 // pred_check_branch
      %109 = sbr.rel (0) target = $region25
    $region24: #{tpu_custom_call.1} parent=1 // pred_region
      %111 = dma.done [#allocation4], 16
    $region25: #{tpu_custom_call.1} parent=1 // pred_fallthru
      _
    %112 = vsyncpa [#allocation3], 1
    %113 = vsyncpa [#allocation6], 1
    %114 = vsyncpa [#allocation4], 1

</llo_original>
